<compile_context>
chip_gen: v7x
topology: tpu7x:2x2x1
jax: 0.10.0
libtpu: 0.0.40
codegen_flags: <defaults>
</compile_context>

<pallas_src>
import numpy as np
import jax
import jax.numpy as jnp
from jax.experimental import pallas as pl
from jax.experimental.pallas import tpu as pltpu


def _round_up(x, m):
    return (x + m - 1) // m * m


# ----------------------------------------------------------------------------
# Pallas kernel: depthwise causal conv (roll-based) + D*u skip connection
# ----------------------------------------------------------------------------
def _conv_reservoir_kernel(u_ref, k_ref, d_ref, y_ref, buf_ref):
    # u_ref  : (TR, L)   input rows (one row = one (batch, channel) pair)
    # k_ref  : (TR, Lk)  per-row real conv taps (K[h] replicated over batch)
    # d_ref  : (TR, 1)   per-row skip weight D[h]
    # y_ref  : (TR, L)   output rows
    # buf_ref: (TR, Lp)  f32 VMEM scratch, Lp = round_up(L + Lk - 1, 128)
    tr, L = u_ref.shape
    Lk = k_ref.shape[-1]

    # Stage u into a lane-aligned buffer with >= Lk-1 trailing zero lanes so
    # pltpu.roll's circular wrap brings in zeros -> causal (linear) conv.
    # Zeroing the whole buffer + offset-0 store keeps only well-supported
    # store shapes and also stays correct under megacore grid sharding.
    buf_ref[...] = jnp.zeros_like(buf_ref)
    buf_ref[:, :L] = u_ref[...].astype(jnp.float32)

    x = buf_ref[...]                                        # (TR, Lp) f32
    d = d_ref[...].astype(jnp.float32)                      # (TR, 1)

    # Tap 0 has zero shift; fold the D*u skip term into it.
    acc = (d + k_ref[:, 0:1].astype(jnp.float32)) * x
    # Static unroll over taps: 1 XLU roll + 1 VALU mul-add per tap.  Lk is
    # small for reservoir kernels; for very large Lk switch to a bounded
    # lax.fori_loop over tap blocks or a banded-Toeplitz MXU matmul.
    for k in range(1, Lk):
        tap = k_ref[:, k:k + 1].astype(jnp.float32)         # (TR, 1)
        acc = acc + tap * pltpu.roll(x, shift=k, axis=1)

    y_ref[...] = acc[:, :L].astype(y_ref.dtype)


# ----------------------------------------------------------------------------
# Wrapper: row folding, tile selection, BlockSpecs, grid over row tiles
# ----------------------------------------------------------------------------
def fft_conv_reservoir_forward(u, K_real, D_bar, *,
                               max_row_tile=256,
                               vmem_budget_bytes=12 * 1024 * 1024):
    """u: (B, H, L); K_real: (H, Lk); D_bar: (H,)  ->  (y, None), y: (B, H, L)."""
    B, H, L = u.shape
    Lk = K_real.shape[-1]
    R = B * H
    R8 = _round_up(R, 8)
    Lp = _round_up(L + Lk - 1, 128)

    # ---- row-tile size: multiple of 8, divides R8, bounded by a VMEM budget
    itemsize = u.dtype.itemsize
    per_row = (2 * L * itemsize          # u input, double-buffered
               + 2 * Lk * 4              # taps, double-buffered
               + 2 * 4                   # D, double-buffered
               + 2 * L * itemsize        # y output, double-buffered
               + Lp * 4)                 # f32 scratch (single buffer)
    cap = max(8, min(int(max_row_tile), vmem_budget_bytes // max(per_row, 1)))
    m = R8 // 8
    if m >= 2:                           # keep >=2 grid steps when possible so
        cap = min(cap, 8 * (m // 2))     # v7x's two TensorCores both get work
    cap = max(cap, 8)
    best = 1
    for div in range(1, m + 1):
        if m % div == 0 and 8 * div <= cap:
            best = div
    tr = 8 * best
    grid_r = R8 // tr

    # ---- host-side layout plumbing only (no padded copy of u along L; the
    #      contiguous (B, H, L) -> (B*H, L) reshape is free)
    u_rows = u.reshape(R, L)
    K_rows = jnp.broadcast_to(K_real.astype(jnp.float32)[None, :, :],
                              (B, H, Lk)).reshape(R, Lk)
    D_rows = jnp.broadcast_to(D_bar.astype(jnp.float32)[None, :],
                              (B, H)).reshape(R, 1)
    if R8 != R:
        pad = ((0, R8 - R), (0, 0))
        u_rows = jnp.pad(u_rows, pad)
        K_rows = jnp.pad(K_rows, pad)
        D_rows = jnp.pad(D_rows, pad)

    y_rows = pl.pallas_call(
        _conv_reservoir_kernel,
        out_shape=jax.ShapeDtypeStruct((R8, L), u.dtype),
        grid_spec=pltpu.PrefetchScalarGridSpec(
            num_scalar_prefetch=0,
            grid=(grid_r,),
            in_specs=[
                pl.BlockSpec((tr, L), lambda r: (r, 0)),    # u rows
                pl.BlockSpec((tr, Lk), lambda r: (r, 0)),   # taps
                pl.BlockSpec((tr, 1), lambda r: (r, 0)),    # D
            ],
            out_specs=pl.BlockSpec((tr, L), lambda r: (r, 0)),
            scratch_shapes=[pltpu.VMEM((tr, Lp), jnp.float32)],
        ),
        compiler_params=pltpu.CompilerParams(
            dimension_semantics=("parallel",),
            vmem_limit_bytes=32 * 1024 * 1024,
        ),
    )(u_rows, K_rows, D_rows)

    y = y_rows[:R].reshape(B, H, L)
    return y, None


# ----------------------------------------------------------------------------
# Deterministic parameter construction (synthetic VandermondeReservoir + D)
# K[h, t] = sum_p C[h,p] B[p,h] A[p]^t with A[p] = r_p * exp(i * theta_p),
# computed with real arithmetic (no complex pow on TPU).
# ----------------------------------------------------------------------------
def build_params(d_input, d_state, L_k, min_scaleD=0.0, max_scaleD=1.0, seed=0):
    key = jax.random.PRNGKey(seed)
    k_r, k_th, k_B, k_C, k_D = jax.random.split(key, 5)

    radius = jax.random.uniform(k_r, (d_state,), minval=0.5, maxval=0.95)
    theta = jax.random.uniform(k_th, (d_state,), minval=0.0, maxval=2 * np.pi)
    Bm = jax.random.normal(k_B, (d_state, d_input)) / np.sqrt(d_state)
    Cm = jax.random.normal(k_C, (d_input, d_state)) / np.sqrt(d_state)

    t = jnp.arange(L_k, dtype=jnp.float32)
    mag = radius[:, None] ** t[None, :]                     # r^t       (P, Lk)
    ang = theta[:, None] * t[None, :]                       # t*theta   (P, Lk)
    vand_re = mag * jnp.cos(ang)
    vand_im = mag * jnp.sin(ang)
    coeff = Cm.T * Bm                                       # (P, H) real

    K_re = jnp.einsum("ph,pt->ht", coeff, vand_re)          # (H, Lk)
    K_im = jnp.einsum("ph,pt->ht", coeff, vand_im)          # (H, Lk)

    D_bar = (min_scaleD + (max_scaleD - min_scaleD)
             * jax.random.uniform(k_D, (d_input,)))
    return (K_re.astype(jnp.float32), K_im.astype(jnp.float32),
            D_bar.astype(jnp.float32))


# ----------------------------------------------------------------------------
# Pure-numpy FFT reference (identical to the PyTorch forward semantics)
# ----------------------------------------------------------------------------
def reference_forward(u, K_complex, D_bar):
    u = np.asarray(u)
    K = np.asarray(K_complex)
    D = np.asarray(D_bar)
    L = u.shape[-1]
    N = L + K.shape[-1] - 1
    y = np.fft.ifft(
        np.fft.fft(u, n=N, axis=-1) * np.fft.fft(K, n=N, axis=-1), n=N, axis=-1
    ).real[..., :L]
    return y + D[None, :, None] * u


if __name__ == "__main__":
    B, H, P, L, L_k = 2, 4, 8, 16, 8

    K_re, K_im, D_bar = build_params(d_input=H, d_state=P, L_k=L_k,
                                     min_scaleD=0.0, max_scaleD=1.0, seed=0)
    u = jax.random.normal(jax.random.PRNGKey(0), (B, H, L), dtype=jnp.float32)

    y, state = fft_conv_reservoir_forward(u, K_re, D_bar)
    y = jax.block_until_ready(y)
    assert state is None
    assert y.shape == (B, H, L)

    # TODO(synk): the recurrent step() path of the module is not implemented
    # (only the convolutional forward is needed here).
    K_complex = np.asarray(K_re).astype(np.complex64) + 1j * np.asarray(K_im)
    y_ref = reference_forward(u, K_complex, D_bar)
    np.testing.assert_allclose(np.asarray(y), y_ref, rtol=1e-4, atol=1e-4)

    print("KERNEL_OK")
</pallas_src>

<mosaic_0001>
module attributes {stable_mosaic.version = 11 : i64} {
  func.func @_conv_reservoir_kernel(%arg0: i32, %arg1: memref<8x16xf32, #tpu.memory_space<vmem>>, %arg2: memref<8x8xf32, #tpu.memory_space<vmem>>, %arg3: memref<8x1xf32, #tpu.memory_space<vmem>>, %arg4: memref<8x16xf32, #tpu.memory_space<vmem>>, %arg5: memref<8x128xf32, #tpu.memory_space<vmem>>) attributes {dimension_semantics = [#tpu.dimension_semantics<parallel>], iteration_bounds = array<i64: 1>, scalar_prefetch = 0 : i64, scratch_operands = 1 : i64, tpu.core_type = #tpu.core_type<tc>, window_params = [{transform_indices = @transform_0, window_bounds = array<i64: 8, 16>}, {transform_indices = @transform_1, window_bounds = array<i64: 8, 8>}, {transform_indices = @transform_2, window_bounds = array<i64: 8, 1>}, {transform_indices = @transform_3, window_bounds = array<i64: 8, 16>}]} {
    %cst = arith.constant 0.000000e+00 : f32
    %0 = vector.broadcast %cst : f32 to vector<8x128xf32>
    %c0 = arith.constant 0 : index
    %c0_0 = arith.constant 0 : index
    %1 = vector.load %arg5[%c0, %c0_0] : memref<8x128xf32, #tpu.memory_space<vmem>>, vector<8x128xf32>
    tpu.vector_store %arg5[%c0, %c0_0], %0 {strides = array<i32>} : memref<8x128xf32, #tpu.memory_space<vmem>>, vector<8x128xf32>,
    %c0_1 = arith.constant 0 : index
    %c0_2 = arith.constant 0 : index
    %2 = vector.load %arg1[%c0_1, %c0_2] : memref<8x16xf32, #tpu.memory_space<vmem>>, vector<8x16xf32>
    %c0_3 = arith.constant 0 : index
    %c0_4 = arith.constant 0 : index
    %3 = vector.load %arg5[%c0_3, %c0_4] : memref<8x128xf32, #tpu.memory_space<vmem>>, vector<8x16xf32>
    tpu.vector_store %arg5[%c0_3, %c0_4], %2 {strides = array<i32>} : memref<8x128xf32, #tpu.memory_space<vmem>>, vector<8x16xf32>,
    %c0_5 = arith.constant 0 : index
    %c0_6 = arith.constant 0 : index
    %4 = vector.load %arg5[%c0_5, %c0_6] : memref<8x128xf32, #tpu.memory_space<vmem>>, vector<8x128xf32>
    %c0_7 = arith.constant 0 : index
    %c0_8 = arith.constant 0 : index
    %5 = vector.load %arg3[%c0_7, %c0_8] : memref<8x1xf32, #tpu.memory_space<vmem>>, vector<8x1xf32>
    %c0_9 = arith.constant 0 : index
    %c0_10 = arith.constant 0 : index
    %6 = vector.load %arg2[%c0_9, %c0_10] : memref<8x8xf32, #tpu.memory_space<vmem>>, vector<8x1xf32>
    %7 = arith.addf %5, %6 : vector<8x1xf32>
    %8 = vector.broadcast %7 : vector<8x1xf32> to vector<8x128xf32>
    %9 = arith.mulf %8, %4 : vector<8x128xf32>
    %c0_11 = arith.constant 0 : index
    %c1 = arith.constant 1 : index
    %10 = vector.load %arg2[%c0_11, %c1] : memref<8x8xf32, #tpu.memory_space<vmem>>, vector<8x1xf32>
    %c1_i32 = arith.constant 1 : i32
    %11 = tpu.dynamic_rotate %4 by %c1_i32 dim 1 : vector<8x128xf32>, i32 -> vector<8x128xf32>
    %12 = vector.broadcast %10 : vector<8x1xf32> to vector<8x128xf32>
    %13 = arith.mulf %12, %11 : vector<8x128xf32>
    %14 = arith.addf %9, %13 : vector<8x128xf32>
    %c0_12 = arith.constant 0 : index
    %c2 = arith.constant 2 : index
    %15 = vector.load %arg2[%c0_12, %c2] : memref<8x8xf32, #tpu.memory_space<vmem>>, vector<8x1xf32>
    %c2_i32 = arith.constant 2 : i32
    %16 = tpu.dynamic_rotate %4 by %c2_i32 dim 1 : vector<8x128xf32>, i32 -> vector<8x128xf32>
    %17 = vector.broadcast %15 : vector<8x1xf32> to vector<8x128xf32>
    %18 = arith.mulf %17, %16 : vector<8x128xf32>
    %19 = arith.addf %14, %18 : vector<8x128xf32>
    %c0_13 = arith.constant 0 : index
    %c3 = arith.constant 3 : index
    %20 = vector.load %arg2[%c0_13, %c3] : memref<8x8xf32, #tpu.memory_space<vmem>>, vector<8x1xf32>
    %c3_i32 = arith.constant 3 : i32
    %21 = tpu.dynamic_rotate %4 by %c3_i32 dim 1 : vector<8x128xf32>, i32 -> vector<8x128xf32>
    %22 = vector.broadcast %20 : vector<8x1xf32> to vector<8x128xf32>
    %23 = arith.mulf %22, %21 : vector<8x128xf32>
    %24 = arith.addf %19, %23 : vector<8x128xf32>
    %c0_14 = arith.constant 0 : index
    %c4 = arith.constant 4 : index
    %25 = vector.load %arg2[%c0_14, %c4] : memref<8x8xf32, #tpu.memory_space<vmem>>, vector<8x1xf32>
    %c4_i32 = arith.constant 4 : i32
    %26 = tpu.dynamic_rotate %4 by %c4_i32 dim 1 : vector<8x128xf32>, i32 -> vector<8x128xf32>
    %27 = vector.broadcast %25 : vector<8x1xf32> to vector<8x128xf32>
    %28 = arith.mulf %27, %26 : vector<8x128xf32>
    %29 = arith.addf %24, %28 : vector<8x128xf32>
    %c0_15 = arith.constant 0 : index
    %c5 = arith.constant 5 : index
    %30 = vector.load %arg2[%c0_15, %c5] : memref<8x8xf32, #tpu.memory_space<vmem>>, vector<8x1xf32>
    %c5_i32 = arith.constant 5 : i32
    %31 = tpu.dynamic_rotate %4 by %c5_i32 dim 1 : vector<8x128xf32>, i32 -> vector<8x128xf32>
    %32 = vector.broadcast %30 : vector<8x1xf32> to vector<8x128xf32>
    %33 = arith.mulf %32, %31 : vector<8x128xf32>
    %34 = arith.addf %29, %33 : vector<8x128xf32>
    %c0_16 = arith.constant 0 : index
    %c6 = arith.constant 6 : index
    %35 = vector.load %arg2[%c0_16, %c6] : memref<8x8xf32, #tpu.memory_space<vmem>>, vector<8x1xf32>
    %c6_i32 = arith.constant 6 : i32
    %36 = tpu.dynamic_rotate %4 by %c6_i32 dim 1 : vector<8x128xf32>, i32 -> vector<8x128xf32>
    %37 = vector.broadcast %35 : vector<8x1xf32> to vector<8x128xf32>
    %38 = arith.mulf %37, %36 : vector<8x128xf32>
    %39 = arith.addf %34, %38 : vector<8x128xf32>
    %c0_17 = arith.constant 0 : index
    %c7 = arith.constant 7 : index
    %40 = vector.load %arg2[%c0_17, %c7] : memref<8x8xf32, #tpu.memory_space<vmem>>, vector<8x1xf32>
    %c7_i32 = arith.constant 7 : i32
    %41 = tpu.dynamic_rotate %4 by %c7_i32 dim 1 : vector<8x128xf32>, i32 -> vector<8x128xf32>
    %42 = vector.broadcast %40 : vector<8x1xf32> to vector<8x128xf32>
    %43 = arith.mulf %42, %41 : vector<8x128xf32>
    %44 = arith.addf %39, %43 : vector<8x128xf32>
    %45 = vector.extract_strided_slice %44 {offsets = [0, 0], sizes = [8, 16], strides = [1, 1]} : vector<8x128xf32> to vector<8x16xf32>
    %c0_18 = arith.constant 0 : index
    %c0_19 = arith.constant 0 : index
    %46 = vector.load %arg4[%c0_18, %c0_19] : memref<8x16xf32, #tpu.memory_space<vmem>>, vector<8x16xf32>
    tpu.vector_store %arg4[%c0_18, %c0_19], %45 {strides = array<i32>} : memref<8x16xf32, #tpu.memory_space<vmem>>, vector<8x16xf32>,
    return
  }
  func.func @transform_0(%arg0: i32) -> (i32, i32) {
    %c0_i32 = arith.constant 0 : i32
    %c0_i32_0 = arith.constant 0 : i32
    return %arg0, %c0_i32 : i32, i32
  }
  func.func @transform_1(%arg0: i32) -> (i32, i32) {
    %c0_i32 = arith.constant 0 : i32
    %c0_i32_0 = arith.constant 0 : i32
    return %arg0, %c0_i32 : i32, i32
  }
  func.func @transform_2(%arg0: i32) -> (i32, i32) {
    %c0_i32 = arith.constant 0 : i32
    %c0_i32_0 = arith.constant 0 : i32
    return %arg0, %c0_i32 : i32, i32
  }
  func.func @transform_3(%arg0: i32) -> (i32, i32) {
    %c0_i32 = arith.constant 0 : i32
    %c0_i32_0 = arith.constant 0 : i32
    return %arg0, %c0_i32 : i32, i32
  }
}

</mosaic_0001>

<llo_original>
// kernel: tpu_custom_call.1
$region0: #{tpu_custom_call.1}
  #allocation0 [shape = 'u32[]', space=smem, size = 0x4, offset = 0x4, fixed_abs, tag = 'smem constant byte address 0x4 - core index']
  #allocation1 [shape = 'u32[144,128]{1,0:T(1,128)}', space=vmem, size = 0x12000, scoped, tag = 'internal scratch']
  #allocation2 [shape = 'f32[8,128]{1,0:T(8,128)}', space=vmem, size = 0x1000, scoped, tag = 'scratch operand']
  %s0 = inlined_call_operand.vmem [shape: f32[8,16], index: 0, kind: input, shape index: {}]
  %s1 = inlined_call_operand.hbm [shape: f32[8,8], index: 1, kind: input, shape index: {}]
  %s2 = inlined_call_operand.vmem [shape: f32[8,1], index: 2, kind: input, shape index: {}]
  %s3 = inlined_call_operand.hbm [shape: f32[8,16], index: 3, kind: output, shape index: {}]
  %s4 = sld [smem:[#allocation0]]
  $region26: #{tpu_custom_call.1} parent=0
    _
  %s6 = ssub.s32 1, %s4
  %s7 = scalar_select 0, %s6, %s4
  $region1: #{tpu_custom_call.1} parent=0
    #allocation3 [shape = 'u8[4096]{0}', space=vmem, size = 0x1000, scoped, tag = 'input window, operand 1, single buffered']
    #allocation4 [shape = 's32[1]{0}', space=sflag, size = 0x4, scoped, tag = 'scoped memory for tpu_custom_call.1']
    #allocation5 [shape = 's32[1]{0}', space=sflag, size = 0x4, scoped, tag = 'scoped memory for tpu_custom_call.1']
    #allocation6 [shape = 'u8[4096]{0}', space=vmem, size = 0x1000, scoped, tag = 'output window, operand 0, single buffered']
    %8 = vsyncpa [#allocation4], 0
    %9 = vsyncpa [#allocation5], 0
    // Predicated region
    $region2: #{tpu_custom_call.1} parent=1 // pred_check
      _
    $region3: #{tpu_custom_call.1} parent=1 // pred_check_branch
      %11 = sbr.rel (0) target = $region5
    $region4: #{tpu_custom_call.1} parent=1 // pred_region
      _
    $region5: #{tpu_custom_call.1} parent=1 // pred_fallthru
      _
    // Predicated region
    $region6: #{tpu_custom_call.1} parent=1 // pred_check
      _
    $region7: #{tpu_custom_call.1} parent=1 // pred_check_branch
      %13 = sbr.rel (0) target = $region9
    $region8: #{tpu_custom_call.1} parent=1 // pred_region
      %s15 = ssub.s32 128, 128
      %16 = vsyncadd [#allocation4], %s15
      %s18 = sshll.u32 [#allocation3], 4
      %s19 = int_to_ptr.vmem [resolvable:$true] %s18
      %21 = dma.hbm_to_vmem [thread:$0]  %s1, 128, %s19, [#allocation4]
    $region9: #{tpu_custom_call.1} parent=1 // pred_fallthru
      _
    // Predicated region
    $region10: #{tpu_custom_call.1} parent=1 // pred_check
      _
    $region11: #{tpu_custom_call.1} parent=1 // pred_check_branch
      %23 = sbr.rel (0) target = $region13
    $region12: #{tpu_custom_call.1} parent=1 // pred_region
      _
    $region13: #{tpu_custom_call.1} parent=1 // pred_fallthru
      _
    // Predicated region
    $region14: #{tpu_custom_call.1} parent=1 // pred_check
      _
    $region15: #{tpu_custom_call.1} parent=1 // pred_check_branch
      %25 = sbr.rel (0) target = $region17
    $region16: #{tpu_custom_call.1} parent=1 // pred_region
      %26 = dma.done [#allocation4], 128
    $region17: #{tpu_custom_call.1} parent=1 // pred_fallthru
      _
    %27 = vst [vmem:[#allocation2] sm:$0xff] 0.0
    %v28 = vld [vmem:[%s0] sm:$0xff]
    %vm29 = vcmask 130048
    %30 = vst.msk [vmem:[#allocation2] sm:$0xff] %vm29, %v28
    %v31 = vld [vmem:[#allocation2] sm:$0xff]
    %v32 = vld [vmem:[%s2] sm:$0xff]
    %v33 = vld [vmem:[#allocation3] sm:$0xff]
    %v34 = vadd.f32 %v32, %v33
    %36 = vset.pattern.permute.xlu0 0
    %37 = vperm.xlu0 %36, %v34
    %v38 = vpop.permute.xlu0 %37
    %v40 = vmul.f32 %v38, %v31
    %41 = vrot.lane.b32.xlu0 %v31, 1
    %v42 = vpop.permute.xlu0 %41
    %44 = vset.pattern.permute.xlu0 1
    %45 = vperm.xlu0 %44, %v33
    %v46 = vpop.permute.xlu0 %45
    %v48 = vmul.f32 %v46, %v42
    %v49 = vadd.f32 %v40, %v48
    %50 = vrot.lane.b32.xlu0 %v31, 2
    %v51 = vpop.permute.xlu0 %50
    %52 = vset.pattern.permute.xlu0 2
    %53 = vperm.xlu0 %52, %v33
    %v54 = vpop.permute.xlu0 %53
    %v56 = vmul.f32 %v54, %v51
    %v57 = vadd.f32 %v49, %v56
    %58 = vrot.lane.b32.xlu0 %v31, 3
    %v59 = vpop.permute.xlu0 %58
    %60 = vset.pattern.permute.xlu0 3
    %61 = vperm.xlu0 %60, %v33
    %v62 = vpop.permute.xlu0 %61
    %v64 = vmul.f32 %v62, %v59
    %v65 = vadd.f32 %v57, %v64
    %66 = vrot.lane.b32.xlu0 %v31, 4
    %v67 = vpop.permute.xlu0 %66
    %68 = vset.pattern.permute.xlu0 4
    %69 = vperm.xlu0 %68, %v33
    %v70 = vpop.permute.xlu0 %69
    %v72 = vmul.f32 %v70, %v67
    %v73 = vadd.f32 %v65, %v72
    %74 = vrot.lane.b32.xlu0 %v31, 5
    %v75 = vpop.permute.xlu0 %74
    %76 = vset.pattern.permute.xlu0 5
    %77 = vperm.xlu0 %76, %v33
    %v78 = vpop.permute.xlu0 %77
    %v80 = vmul.f32 %v78, %v75
    %v81 = vadd.f32 %v73, %v80
    %82 = vrot.lane.b32.xlu0 %v31, 6
    %v83 = vpop.permute.xlu0 %82
    %84 = vset.pattern.permute.xlu0 6
    %85 = vperm.xlu0 %84, %v33
    %v86 = vpop.permute.xlu0 %85
    %v88 = vmul.f32 %v86, %v83
    %v89 = vadd.f32 %v81, %v88
    %90 = vrot.lane.b32.xlu0 %v31, 7
    %v91 = vpop.permute.xlu0 %90
    %92 = vset.pattern.permute.xlu0 7
    %93 = vperm.xlu0 %92, %v33
    %v94 = vpop.permute.xlu0 %93
    %v96 = vmul.f32 %v94, %v91
    %v97 = vadd.f32 %v89, %v96
    %98 = vst.msk [vmem:[#allocation6] sm:$0xff] %vm29, %v97
    // Predicated region
    $region18: #{tpu_custom_call.1} parent=1 // pred_check
      _
    $region19: #{tpu_custom_call.1} parent=1 // pred_check_branch
      %100 = sbr.rel (0) target = $region21
    $region20: #{tpu_custom_call.1} parent=1 // pred_region
      %s102 = ssub.s32 128, 128
      %103 = vsyncadd [#allocation5], %s102
      %s105 = sshll.u32 [#allocation6], 4
      %s106 = int_to_ptr.vmem [resolvable:$true] %s105
      %108 = dma.vmem_to_hbm [thread:$0]  %s106, 128, %s3, [#allocation5]
    $region21: #{tpu_custom_call.1} parent=1 // pred_fallthru
      _
    // Predicated region
    $region22: #{tpu_custom_call.1} parent=1 // pred_check
      _
    $region23: #{tpu_custom_call.1} parent=1 // pred_check_branch
      %110 = sbr.rel (0) target = $region25
    $region24: #{tpu_custom_call.1} parent=1 // pred_region
      %111 = dma.done [#allocation5], 128
    $region25: #{tpu_custom_call.1} parent=1 // pred_fallthru
      _
    %112 = vsyncpa [#allocation4], 1
    %113 = vsyncpa [#allocation5], 1

</llo_original>
